<compile_context>
chip_gen: v6e
topology: v6e:2x2x1
jax: 0.10.0
libtpu: 0.0.40
codegen_flags: <defaults>
</compile_context>

<pallas_src>
import jax
import jax.numpy as jnp
from jax.experimental import pallas as pl
from jax.experimental.pallas import tpu as pltpu

# ---- hyper-params (stand in for the `params` object of the PyTorch module) ----
TOTAL_ENT = 64
TOTAL_REL = 16
EMBED_DIM = 128          # D -> lane axis
BATCH = 8                # B (first half positive triples, second half negative)
BATCH_TILE = 8           # triples per grid step (== BATCH for this toy demo;
                         # use 256-1024 for realistic batches)
MARGIN = 1.0
P_NORM = 2               # params.p_norm
MAX_NORM = 1.0           # nn.Embedding(..., max_norm=1) on entity embeddings


def _transe_kernel(bh_ref, bt_ref, br_ref,     # (TB, 1) int32 index columns (VMEM)
                   ent_ref, rel_ref,           # VMEM-resident embedding tables
                   score_ref):                 # (1, TB) lane-dense score output
    tb = BATCH_TILE

    h_idx = bh_ref[...]                        # (TB, 1) int32
    t_idx = bt_ref[...]
    r_idx = br_ref[...]

    # ---- fused h/t gather via one-hot matmul on the (otherwise idle) MXU ----
    ht_idx = jnp.concatenate([h_idx, t_idx], axis=0)                    # (2TB, 1)
    ent_iota = jax.lax.broadcasted_iota(jnp.int32, (2 * tb, TOTAL_ENT), 1)
    onehot_ht = (ent_iota == ht_idx).astype(jnp.float32)                # (2TB, E)
    ht = jnp.dot(onehot_ht, ent_ref[...],
                 preferred_element_type=jnp.float32)                    # (2TB, D)

    # nn.Embedding(max_norm=1) renorms looked-up rows to L2 norm <= MAX_NORM.
    # Applied once on the fused h/t block; one EUP rsqrt, no sqrt/divide.
    sumsq = jnp.sum(ht * ht, axis=-1, keepdims=True)                    # (2TB, 1)
    scale = jnp.minimum(1.0, MAX_NORM * jax.lax.rsqrt(sumsq + 1e-12))
    ht = ht * scale

    h = ht[:tb, :]                                                      # (TB, D)
    t = ht[tb:, :]

    # ---- relation gather (no max_norm on rel embeddings) ----
    rel_iota = jax.lax.broadcasted_iota(jnp.int32, (tb, TOTAL_REL), 1)
    onehot_r = (rel_iota == r_idx).astype(jnp.float32)                  # (TB, R)
    r = jnp.dot(onehot_r, rel_ref[...],
                preferred_element_type=jnp.float32)                     # (TB, D)

    d = h + r - t                                                       # (TB, D)

    # score = torch.norm(h + r - t, p, -1), emitted lane-dense as (1, TB).
    if P_NORM == 1:
        s = jnp.sum(jnp.abs(d), axis=-1)                                # (TB,)
    elif P_NORM == 2:
        s = jnp.sqrt(jnp.sum(d * d, axis=-1))                           # (TB,)
    else:
        p = float(P_NORM)
        s = jnp.power(jnp.sum(jnp.power(jnp.abs(d), p), axis=-1), 1.0 / p)
    score_ref[0, :] = s


def transe_forward(ent_emb, rel_emb, batch_h, batch_t, batch_r, batch_y=None):
    """Returns (loss, pos_score, neg_score), matching TransE.forward.

    batch_y is accepted for signature parity but (as in the PyTorch module)
    the ranking-loss target is the constant -1, so it is unused.
    """
    b = batch_h.shape[0]
    assert b % BATCH_TILE == 0
    num_tiles = b // BATCH_TILE

    idx_h = batch_h.astype(jnp.int32).reshape(b, 1)
    idx_t = batch_t.astype(jnp.int32).reshape(b, 1)
    idx_r = batch_r.astype(jnp.int32).reshape(b, 1)

    score_row = pl.pallas_call(
        _transe_kernel,
        out_shape=jax.ShapeDtypeStruct((1, b), jnp.float32),
        grid_spec=pl.GridSpec(
            grid=(num_tiles,),
            in_specs=[
                pl.BlockSpec((BATCH_TILE, 1), lambda i: (i, 0)),
                pl.BlockSpec((BATCH_TILE, 1), lambda i: (i, 0)),
                pl.BlockSpec((BATCH_TILE, 1), lambda i: (i, 0)),
                # Tables stay fully resident (constant block index => no re-DMA
                # across batch tiles).
                pl.BlockSpec((TOTAL_ENT, EMBED_DIM), lambda i: (0, 0)),
                pl.BlockSpec((TOTAL_REL, EMBED_DIM), lambda i: (0, 0)),
            ],
            out_specs=pl.BlockSpec((1, BATCH_TILE), lambda i: (0, i)),
        ),
        compiler_params=pltpu.CompilerParams(
            # Batch tiles are independent -> shard across v7x's two TCs.
            dimension_semantics=("parallel",)),
    )(idx_h, idx_t, idx_r, ent_emb, rel_emb)

    score = score_row[0]                           # (B,)
    half = b // 2
    pos_score = score[:half]
    neg_score = score[half:]
    # MarginRankingLoss(margin, reduction='sum') with target y = -1:
    #   loss = sum_i max(0, pos_i - neg_i + margin)
    loss = jnp.sum(jnp.maximum(pos_score - neg_score + MARGIN, 0.0))
    return loss, pos_score, neg_score


def _xavier_uniform(key, shape):
    # nn.init.xavier_uniform_ on a 2D weight (fan_out, fan_in) = shape
    fan_out, fan_in = shape
    bound = (6.0 / (fan_in + fan_out)) ** 0.5
    return jax.random.uniform(key, shape, jnp.float32, -bound, bound)


def _reference(ent_emb, rel_emb, batch_h, batch_t, batch_r):
    # Pure-JAX reference faithful to the PyTorch forward semantics.
    def renorm(x):
        n = jnp.linalg.norm(x, axis=-1, keepdims=True)
        return x * jnp.minimum(1.0, MAX_NORM / (n + 1e-7))

    h = renorm(jnp.take(ent_emb, batch_h, axis=0))
    t = renorm(jnp.take(ent_emb, batch_t, axis=0))
    r = jnp.take(rel_emb, batch_r, axis=0)
    score = jnp.linalg.norm(h + r - t, ord=P_NORM, axis=-1)
    half = batch_h.shape[0] // 2
    pos, neg = score[:half], score[half:]
    loss = jnp.sum(jnp.maximum(pos - neg + MARGIN, 0.0))
    return loss, pos, neg


if __name__ == "__main__":
    key = jax.random.PRNGKey(0)
    k_ent, k_rel, k_h, k_t, k_r = jax.random.split(key, 5)

    # Deterministic parameter init (shapes from the module's __init__).
    ent_emb = _xavier_uniform(k_ent, (TOTAL_ENT, EMBED_DIM))
    rel_emb = _xavier_uniform(k_rel, (TOTAL_REL, EMBED_DIM))

    batch_h = jax.random.randint(k_h, (BATCH,), 0, TOTAL_ENT, dtype=jnp.int32)
    batch_t = jax.random.randint(k_t, (BATCH,), 0, TOTAL_ENT, dtype=jnp.int32)
    batch_r = jax.random.randint(k_r, (BATCH,), 0, TOTAL_REL, dtype=jnp.int32)
    batch_y = jnp.full((BATCH,), -1.0, jnp.float32)  # unused, as in the PyTorch forward

    loss, pos_score, neg_score = transe_forward(
        ent_emb, rel_emb, batch_h, batch_t, batch_r, batch_y
    )
    jax.block_until_ready((loss, pos_score, neg_score))

    # Sanity-check against a pure-JAX reference of the same math.
    ref_loss, ref_pos, ref_neg = _reference(ent_emb, rel_emb, batch_h, batch_t, batch_r)
    assert jnp.allclose(loss, ref_loss, rtol=1e-3, atol=1e-3), (loss, ref_loss)
    assert jnp.allclose(pos_score, ref_pos, rtol=1e-3, atol=1e-3)
    assert jnp.allclose(neg_score, ref_neg, rtol=1e-3, atol=1e-3)

    print("KERNEL_OK")
</pallas_src>

<mosaic_0001>
module attributes {stable_mosaic.version = 11 : i64} {
  func.func @_transe_kernel(%arg0: i32, %arg1: memref<8x1xi32, #tpu.memory_space<vmem>>, %arg2: memref<8x1xi32, #tpu.memory_space<vmem>>, %arg3: memref<8x1xi32, #tpu.memory_space<vmem>>, %arg4: memref<64x128xf32, #tpu.memory_space<vmem>>, %arg5: memref<16x128xf32, #tpu.memory_space<vmem>>, %arg6: memref<1x8xf32, #tpu.memory_space<vmem>>) attributes {dimension_semantics = [#tpu.dimension_semantics<parallel>], iteration_bounds = array<i64: 1>, scalar_prefetch = 0 : i64, scratch_operands = 0 : i64, tpu.core_type = #tpu.core_type<tc>, window_params = [{transform_indices = @transform_0, window_bounds = array<i64: 8, 1>}, {transform_indices = @transform_1, window_bounds = array<i64: 8, 1>}, {transform_indices = @transform_2, window_bounds = array<i64: 8, 1>}, {pipeline_mode = #tpu.pipeline_mode<synchronous>, transform_indices = @transform_3, window_bounds = array<i64: 64, 128>}, {pipeline_mode = #tpu.pipeline_mode<synchronous>, transform_indices = @transform_4, window_bounds = array<i64: 16, 128>}, {transform_indices = @transform_5, window_bounds = array<i64: 1, 8>}]} {
    %c0 = arith.constant 0 : index
    %c0_0 = arith.constant 0 : index
    %0 = vector.load %arg1[%c0, %c0_0] : memref<8x1xi32, #tpu.memory_space<vmem>>, vector<8x1xi32>
    %c0_1 = arith.constant 0 : index
    %c0_2 = arith.constant 0 : index
    %1 = vector.load %arg2[%c0_1, %c0_2] : memref<8x1xi32, #tpu.memory_space<vmem>>, vector<8x1xi32>
    %c0_3 = arith.constant 0 : index
    %c0_4 = arith.constant 0 : index
    %2 = vector.load %arg3[%c0_3, %c0_4] : memref<8x1xi32, #tpu.memory_space<vmem>>, vector<8x1xi32>
    %3 = tpu.concatenate %0, %1 in 0 : vector<8x1xi32>, vector<8x1xi32> -> vector<16x1xi32>
    %4 = tpu.iota {dimensions = array<i32: 1>} : vector<16x64xi32>
    %5 = vector.broadcast %3 : vector<16x1xi32> to vector<16x64xi32>
    %6 = arith.cmpi eq, %4, %5 : vector<16x64xi32>
    %7 = arith.extui %6 : vector<16x64xi1> to vector<16x64xi32>
    %8 = arith.sitofp %7 : vector<16x64xi32> to vector<16x64xf32>
    %c0_5 = arith.constant 0 : index
    %c0_6 = arith.constant 0 : index
    %9 = vector.load %arg4[%c0_5, %c0_6] : memref<64x128xf32, #tpu.memory_space<vmem>>, vector<64x128xf32>
    %cst = arith.constant dense<0.000000e+00> : vector<16x128xf32>
    %10 = tpu.matmul %8, %9, %cst {dimension_numbers = #tpu.dot_dimension_numbers<[1], [0], [0], [1], [0, 0, 1, 1], [], []>} : vector<16x64xf32>, vector<64x128xf32>, vector<16x128xf32> -> vector<16x128xf32>
    %11 = arith.mulf %10, %10 : vector<16x128xf32>
    %cst_7 = arith.constant dense<0.000000e+00> : vector<16xf32>
    %12 = vector.multi_reduction <add>, %11, %cst_7 [1] : vector<16x128xf32> to vector<16xf32>
    %13 = vector.shape_cast %12 : vector<16xf32> to vector<16x1xf32>
    %cst_8 = arith.constant 9.99999996E-13 : f32
    %14 = vector.broadcast %cst_8 : f32 to vector<16x1xf32>
    %15 = arith.addf %13, %14 : vector<16x1xf32>
    %16 = math.rsqrt %15 : vector<16x1xf32>
    %cst_9 = arith.constant 1.000000e+00 : f32
    %17 = vector.broadcast %cst_9 : f32 to vector<16x1xf32>
    %18 = arith.mulf %17, %16 : vector<16x1xf32>
    %cst_10 = arith.constant 1.000000e+00 : f32
    %19 = vector.broadcast %cst_10 : f32 to vector<16x1xf32>
    %20 = arith.minimumf %19, %18 : vector<16x1xf32>
    %21 = vector.broadcast %20 : vector<16x1xf32> to vector<16x128xf32>
    %22 = arith.mulf %10, %21 : vector<16x128xf32>
    %23 = vector.extract_strided_slice %22 {offsets = [0, 0], sizes = [8, 128], strides = [1, 1]} : vector<16x128xf32> to vector<8x128xf32>
    %24 = vector.extract_strided_slice %22 {offsets = [8, 0], sizes = [8, 128], strides = [1, 1]} : vector<16x128xf32> to vector<8x128xf32>
    %25 = tpu.iota {dimensions = array<i32: 1>} : vector<8x16xi32>
    %26 = vector.broadcast %2 : vector<8x1xi32> to vector<8x16xi32>
    %27 = arith.cmpi eq, %25, %26 : vector<8x16xi32>
    %28 = arith.extui %27 : vector<8x16xi1> to vector<8x16xi32>
    %29 = arith.sitofp %28 : vector<8x16xi32> to vector<8x16xf32>
    %c0_11 = arith.constant 0 : index
    %c0_12 = arith.constant 0 : index
    %30 = vector.load %arg5[%c0_11, %c0_12] : memref<16x128xf32, #tpu.memory_space<vmem>>, vector<16x128xf32>
    %cst_13 = arith.constant dense<0.000000e+00> : vector<8x128xf32>
    %31 = tpu.matmul %29, %30, %cst_13 {dimension_numbers = #tpu.dot_dimension_numbers<[1], [0], [0], [1], [0, 0, 1, 1], [], []>} : vector<8x16xf32>, vector<16x128xf32>, vector<8x128xf32> -> vector<8x128xf32>
    %32 = arith.addf %23, %31 : vector<8x128xf32>
    %33 = arith.subf %32, %24 : vector<8x128xf32>
    %34 = arith.mulf %33, %33 : vector<8x128xf32>
    %cst_14 = arith.constant dense<0.000000e+00> : vector<8xf32>
    %35 = vector.multi_reduction <add>, %34, %cst_14 [1] : vector<8x128xf32> to vector<8xf32>
    %36 = math.sqrt %35 : vector<8xf32>
    %c0_15 = arith.constant 0 : index
    %c0_16 = arith.constant 0 : index
    %37 = vector.load %arg6[%c0_15, %c0_16] : memref<1x8xf32, #tpu.memory_space<vmem>>, vector<1x8xf32>
    %38 = vector.shape_cast %37 : vector<1x8xf32> to vector<8xf32>
    %39 = vector.shape_cast %36 : vector<8xf32> to vector<1x8xf32>
    tpu.vector_store %arg6[%c0_15, %c0_16], %39 {strides = array<i32>} : memref<1x8xf32, #tpu.memory_space<vmem>>, vector<1x8xf32>,
    return
  }
  func.func @transform_0(%arg0: i32) -> (i32, i32) {
    %c0_i32 = arith.constant 0 : i32
    %c0_i32_0 = arith.constant 0 : i32
    return %arg0, %c0_i32 : i32, i32
  }
  func.func @transform_1(%arg0: i32) -> (i32, i32) {
    %c0_i32 = arith.constant 0 : i32
    %c0_i32_0 = arith.constant 0 : i32
    return %arg0, %c0_i32 : i32, i32
  }
  func.func @transform_2(%arg0: i32) -> (i32, i32) {
    %c0_i32 = arith.constant 0 : i32
    %c0_i32_0 = arith.constant 0 : i32
    return %arg0, %c0_i32 : i32, i32
  }
  func.func @transform_3(%arg0: i32) -> (i32, i32) {
    %c0_i32 = arith.constant 0 : i32
    %c0_i32_0 = arith.constant 0 : i32
    %c0_i32_1 = arith.constant 0 : i32
    return %c0_i32, %c0_i32_0 : i32, i32
  }
  func.func @transform_4(%arg0: i32) -> (i32, i32) {
    %c0_i32 = arith.constant 0 : i32
    %c0_i32_0 = arith.constant 0 : i32
    %c0_i32_1 = arith.constant 0 : i32
    return %c0_i32, %c0_i32_0 : i32, i32
  }
  func.func @transform_5(%arg0: i32) -> (i32, i32) {
    %c0_i32 = arith.constant 0 : i32
    %c0_i32_0 = arith.constant 0 : i32
    return %c0_i32, %arg0 : i32, i32
  }
}

</mosaic_0001>

<llo_original>
// kernel: tpu_custom_call.1
$region0: #{tpu_custom_call.1}
  #allocation0 [shape = 'u32[]', space=smem, size = 0x4, offset = 0x4, fixed_abs, tag = 'smem constant byte address 0x4 - core index']
  #allocation1 [shape = 'u32[144,128]{1,0:T(1,128)}', space=vmem, size = 0x12000, scoped, tag = 'internal scratch']
  %s0 = inlined_call_operand.vmem [shape: s32[8,1], index: 0, kind: input, shape index: {}]
  %s1 = inlined_call_operand.vmem [shape: s32[8,1], index: 1, kind: input, shape index: {}]
  %s2 = inlined_call_operand.vmem [shape: s32[8,1], index: 2, kind: input, shape index: {}]
  %s3 = inlined_call_operand.hbm [shape: f32[64,128], index: 3, kind: input, shape index: {}]
  %s4 = inlined_call_operand.vmem [shape: f32[16,128], index: 4, kind: input, shape index: {}]
  %s5 = inlined_call_operand.hbm [shape: f32[1,8], index: 5, kind: output, shape index: {}]
  %s6 = sld [smem:[#allocation0]]
  $region34: #{tpu_custom_call.1} parent=0
    _
  %s8 = ssub.s32 1, %s6
  %s9 = scalar_select 0, %s8, %s6
  $region1: #{tpu_custom_call.1} parent=0
    #allocation2 [shape = 'u8[32768]{0}', space=vmem, size = 0x8000, scoped, tag = 'input window, operand 3, single buffered']
    #allocation3 [shape = 's32[1]{0}', space=sflag, size = 0x4, scoped, tag = 'scoped memory for tpu_custom_call.1']
    #allocation4 [shape = 's32[1]{0}', space=sflag, size = 0x4, scoped, tag = 'scoped memory for tpu_custom_call.1']
    #allocation5 [shape = 'u8[512]{0}', space=vmem, size = 0x400, scoped, tag = 'output window, operand 0, single buffered']
    %10 = vsyncpa [#allocation3], 0
    %11 = vsyncpa [#allocation4], 0
    // Predicated region
    $region2: #{tpu_custom_call.1} parent=1 // pred_check
      _
    $region3: #{tpu_custom_call.1} parent=1 // pred_check_branch
      %13 = sbr.rel (0) target = $region5
    $region4: #{tpu_custom_call.1} parent=1 // pred_region
      _
    $region5: #{tpu_custom_call.1} parent=1 // pred_fallthru
      _
    // Predicated region
    $region6: #{tpu_custom_call.1} parent=1 // pred_check
      _
    $region7: #{tpu_custom_call.1} parent=1 // pred_check_branch
      %15 = sbr.rel (0) target = $region9
    $region8: #{tpu_custom_call.1} parent=1 // pred_region
      _
    $region9: #{tpu_custom_call.1} parent=1 // pred_fallthru
      _
    // Predicated region
    $region10: #{tpu_custom_call.1} parent=1 // pred_check
      _
    $region11: #{tpu_custom_call.1} parent=1 // pred_check_branch
      %17 = sbr.rel (0) target = $region13
    $region12: #{tpu_custom_call.1} parent=1 // pred_region
      _
    $region13: #{tpu_custom_call.1} parent=1 // pred_fallthru
      _
    // Predicated region
    $region14: #{tpu_custom_call.1} parent=1 // pred_check
      _
    $region15: #{tpu_custom_call.1} parent=1 // pred_check_branch
      %19 = sbr.rel (0) target = $region17
    $region16: #{tpu_custom_call.1} parent=1 // pred_region
      %s21 = ssub.s32 1024, 1024
      %22 = vsyncadd [#allocation3], %s21
      %s23 = sshll.u32 [#allocation2], 4
      %s24 = int_to_ptr.vmem [resolvable:$true] %s23
      %29 = dma.hbm_to_vmem [thread:$0]  %s3, 1024, %s24, [#allocation3], 128, 128, 8
    $region17: #{tpu_custom_call.1} parent=1 // pred_fallthru
      _
    // Predicated region
    $region18: #{tpu_custom_call.1} parent=1 // pred_check
      _
    $region19: #{tpu_custom_call.1} parent=1 // pred_check_branch
      %31 = sbr.rel (0) target = $region21
    $region20: #{tpu_custom_call.1} parent=1 // pred_region
      _
    $region21: #{tpu_custom_call.1} parent=1 // pred_fallthru
      _
    // Predicated region
    $region22: #{tpu_custom_call.1} parent=1 // pred_check
      _
    $region23: #{tpu_custom_call.1} parent=1 // pred_check_branch
      %33 = sbr.rel (0) target = $region25
    $region24: #{tpu_custom_call.1} parent=1 // pred_region
      %34 = dma.done [#allocation3], 1024
    $region25: #{tpu_custom_call.1} parent=1 // pred_fallthru
      _
    %v35 = vld [vmem:[%s0] sm:$0xff]
    %v36 = vld [vmem:[%s1] sm:$0xff]
    %v37 = vld [vmem:[%s2] sm:$0xff]
    %v38 = vlaneseq
    %v39 = vand.u32 %v38, 127
    %40 = vset.pattern.permute.xlu0 0
    %41 = vperm.xlu0 %40, %v35
    %v42 = vpop.permute.xlu0 %41
    %43 = vset.pattern.permute.xlu0 0
    %44 = vperm.xlu0 %43, %v36
    %v45 = vpop.permute.xlu0 %44
    %vm46 = vcmp.eq.s32.totalorder %v39, %v42
    %vm47 = vcmp.eq.s32.totalorder %v39, %v45
    %v48 = vsel %vm46, 1, 0
    %v49 = vsel %vm47, 1, 0
    %v50 = vcvt.s32.f32 %v48
    %v51 = vcvt.s32.f32 %v49
    %v52 = vld [vmem:[#allocation2] sm:$0xff]
    %v53 = vld [vmem:[#allocation2 + $0x8] sm:$0xff]
    %v54 = vld [vmem:[#allocation2 + $0x10] sm:$0xff]
    %v55 = vld [vmem:[#allocation2 + $0x18] sm:$0xff]
    %v56 = vld [vmem:[#allocation2 + $0x20] sm:$0xff]
    %v57 = vld [vmem:[#allocation2 + $0x28] sm:$0xff]
    %v58 = vld [vmem:[#allocation2 + $0x30] sm:$0xff]
    %v59 = vld [vmem:[#allocation2 + $0x38] sm:$0xff]
    %vm60 = vcmask 523264
    %v62 = vsel %vm60, %v50, 0
    %v65 = vsel %vm60, %v51, 0
    %67 = vmatprep.subr.mxu0 0.0
    %68 = vmatpush1.msra.mxu0 0.0
    %69 = vmatprep.subr.mxu0 0.0
    %70 = vmatpush1.msra.mxu0 0.0
    %71 = vmatprep.subr.mxu0 0.0
    %72 = vmatpush1.msra.mxu0 0.0
    %73 = vmatprep.subr.mxu0 0.0
    %74 = vmatpush1.msra.mxu0 0.0
    %75 = vmatprep.subr.mxu0 0.0
    %76 = vmatpush1.msra.mxu0 0.0
    %77 = vmatprep.subr.mxu0 0.0
    %78 = vmatpush1.msra.mxu0 0.0
    %79 = vmatprep.subr.mxu0 0.0
    %80 = vmatpush1.msra.mxu0 0.0
    %81 = vmatprep.subr.mxu0 0.0
    %82 = vmatpush1.msra.mxu0 0.0
    %83 = vmatprep.subr.mxu0 0.0
    %84 = vmatpush1.msra.mxu0 %v59
    %85 = vmatprep.subr.mxu0 0.0
    %86 = vmatpush1.msra.mxu0 %v58
    %87 = vmatprep.subr.mxu0 0.0
    %88 = vmatpush1.msra.mxu0 %v57
    %89 = vmatprep.subr.mxu0 0.0
    %90 = vmatpush1.msra.mxu0 %v56
    %91 = vmatprep.subr.mxu0 0.0
    %92 = vmatpush1.msra.mxu0 %v55
    %93 = vmatprep.subr.mxu0 0.0
    %94 = vmatpush1.msra.mxu0 %v54
    %95 = vmatprep.subr.mxu0 0.0
    %96 = vmatpush1.msra.mxu0 %v53
    %97 = vmatprep.subr.mxu0 0.0
    %98 = vmatpush1.msra.mxu0 %v52
    %99 = vmatprep.subr.mxu0 0.0
    %100 = vmatpush2.msra.mxu0 0.0
    %101 = vmatprep.subr.mxu0 0.0
    %102 = vmatpush2.msra.mxu0 0.0
    %103 = vmatprep.subr.mxu0 0.0
    %104 = vmatpush2.msra.mxu0 0.0
    %105 = vmatprep.subr.mxu0 0.0
    %106 = vmatpush2.msra.mxu0 0.0
    %107 = vmatprep.subr.mxu0 0.0
    %108 = vmatpush2.msra.mxu0 0.0
    %109 = vmatprep.subr.mxu0 0.0
    %110 = vmatpush2.msra.mxu0 0.0
    %111 = vmatprep.subr.mxu0 0.0
    %112 = vmatpush2.msra.mxu0 0.0
    %113 = vmatprep.subr.mxu0 0.0
    %114 = vmatpush2.msra.mxu0 0.0
    %115 = vmatprep.subr.mxu0 0.0
    %116 = vmatpush2.msra.mxu0 0.0
    %117 = vmatprep.subr.mxu0 0.0
    %118 = vmatpush2.msra.mxu0 0.0
    %119 = vmatprep.subr.mxu0 0.0
    %120 = vmatpush2.msra.mxu0 0.0
    %121 = vmatprep.subr.mxu0 0.0
    %122 = vmatpush2.msra.mxu0 0.0
    %123 = vmatprep.subr.mxu0 0.0
    %124 = vmatpush2.msra.mxu0 0.0
    %125 = vmatprep.subr.mxu0 0.0
    %126 = vmatpush2.msra.mxu0 0.0
    %127 = vmatprep.subr.mxu0 0.0
    %128 = vmatpush2.msra.mxu0 0.0
    %129 = vmatprep.subr.mxu0 0.0
    %130 = vmatpush2.msra.mxu0 0.0
    %131 = vmatprep.mubr.f32.mxu0 0.0
    %132 = vmatmul.mubr.f32.gmra.mxu0 %v62
    %v133 = vpop.f32.mrf.mxu0
    %v134 = vadd.f32 0.0, %v133
    %v135 = vpop.f32.mrf.mxu0
    %136 = vmatprep.mubr.f32.mxu0 0.0
    %137 = vmatmul.mubr.f32.gmra.mxu0 %v65
    %v138 = vpop.f32.mrf.mxu0
    %v139 = vadd.f32 0.0, %v138
    %v140 = vpop.f32.mrf.mxu0
    %141 = vdwg.mxu0
    %v142 = vmul.f32 %v134, %v134
    %v143 = vmul.f32 %v139, %v139
    %144 = vadd.xlane.f32.xlu0 %v142
    %v145 = vpop.xlane.xlu0 %144
    %146 = vadd.xlane.f32.xlu0 %v143
    %v147 = vpop.xlane.xlu0 %146
    %v148 = vadd.f32 %v145, 1e-12
    %v149 = vadd.f32 %v147, 1e-12
    %v150 = vrsqrt.pop %v148
    %v151 = vrsqrt.pop %v149
    %v152 = vmin.f32 %v150, 1.0
    %v153 = vmin.f32 %v151, 1.0
    %v154 = vmul.f32 %v134, %v152
    %v155 = vmul.f32 %v139, %v153
    %156 = vset.pattern.permute.xlu0 0
    %157 = vperm.xlu0 %156, %v37
    %v158 = vpop.permute.xlu0 %157
    %vm159 = vcmp.eq.s32.totalorder %v39, %v158
    %v160 = vsel %vm159, 1, 0
    %v161 = vcvt.s32.f32 %v160
    %v162 = vld [vmem:[%s4] sm:$0xff]
    %v163 = vld [vmem:[%s4 + $0x8] sm:$0xff]
    %vm164 = vcmask 130048
    %v166 = vsel %vm164, %v161, 0
    %168 = vmatprep.subr.mxu0 0.0
    %169 = vmatpush1.msra.mxu0 0.0
    %170 = vmatprep.subr.mxu0 0.0
    %171 = vmatpush1.msra.mxu0 0.0
    %172 = vmatprep.subr.mxu0 0.0
    %173 = vmatpush1.msra.mxu0 0.0
    %174 = vmatprep.subr.mxu0 0.0
    %175 = vmatpush1.msra.mxu0 0.0
    %176 = vmatprep.subr.mxu0 0.0
    %177 = vmatpush1.msra.mxu0 0.0
    %178 = vmatprep.subr.mxu0 0.0
    %179 = vmatpush1.msra.mxu0 0.0
    %180 = vmatprep.subr.mxu0 0.0
    %181 = vmatpush1.msra.mxu0 0.0
    %182 = vmatprep.subr.mxu0 0.0
    %183 = vmatpush1.msra.mxu0 0.0
    %184 = vmatprep.subr.mxu0 0.0
    %185 = vmatpush1.msra.mxu0 0.0
    %186 = vmatprep.subr.mxu0 0.0
    %187 = vmatpush1.msra.mxu0 0.0
    %188 = vmatprep.subr.mxu0 0.0
    %189 = vmatpush1.msra.mxu0 0.0
    %190 = vmatprep.subr.mxu0 0.0
    %191 = vmatpush1.msra.mxu0 0.0
    %192 = vmatprep.subr.mxu0 0.0
    %193 = vmatpush1.msra.mxu0 0.0
    %194 = vmatprep.subr.mxu0 0.0
    %195 = vmatpush1.msra.mxu0 0.0
    %196 = vmatprep.subr.mxu0 0.0
    %197 = vmatpush1.msra.mxu0 %v163
    %198 = vmatprep.subr.mxu0 0.0
    %199 = vmatpush1.msra.mxu0 %v162
    %200 = vmatprep.subr.mxu0 0.0
    %201 = vmatpush2.msra.mxu0 0.0
    %202 = vmatprep.subr.mxu0 0.0
    %203 = vmatpush2.msra.mxu0 0.0
    %204 = vmatprep.subr.mxu0 0.0
    %205 = vmatpush2.msra.mxu0 0.0
    %206 = vmatprep.subr.mxu0 0.0
    %207 = vmatpush2.msra.mxu0 0.0
    %208 = vmatprep.subr.mxu0 0.0
    %209 = vmatpush2.msra.mxu0 0.0
    %210 = vmatprep.subr.mxu0 0.0
    %211 = vmatpush2.msra.mxu0 0.0
    %212 = vmatprep.subr.mxu0 0.0
    %213 = vmatpush2.msra.mxu0 0.0
    %214 = vmatprep.subr.mxu0 0.0
    %215 = vmatpush2.msra.mxu0 0.0
    %216 = vmatprep.subr.mxu0 0.0
    %217 = vmatpush2.msra.mxu0 0.0
    %218 = vmatprep.subr.mxu0 0.0
    %219 = vmatpush2.msra.mxu0 0.0
    %220 = vmatprep.subr.mxu0 0.0
    %221 = vmatpush2.msra.mxu0 0.0
    %222 = vmatprep.subr.mxu0 0.0
    %223 = vmatpush2.msra.mxu0 0.0
    %224 = vmatprep.subr.mxu0 0.0
    %225 = vmatpush2.msra.mxu0 0.0
    %226 = vmatprep.subr.mxu0 0.0
    %227 = vmatpush2.msra.mxu0 0.0
    %228 = vmatprep.subr.mxu0 0.0
    %229 = vmatpush2.msra.mxu0 0.0
    %230 = vmatprep.subr.mxu0 0.0
    %231 = vmatpush2.msra.mxu0 0.0
    %232 = vmatprep.mubr.f32.mxu0 0.0
    %233 = vmatmul.mubr.f32.gmra.mxu0 %v166
    %v234 = vpop.f32.mrf.mxu0
    %v235 = vadd.f32 0.0, %v234
    %v236 = vpop.f32.mrf.mxu0
    %237 = vdwg.mxu0
    %v238 = vadd.f32 %v154, %v235
    %v239 = vsub.f32 %v238, %v155
    %v240 = vmul.f32 %v239, %v239
    %241 = vadd.xlane.f32.xlu0 %v240
    %v242 = vpop.xlane.xlu0 %241
    %v243 = vrsqrt.pop %v242
    %v244 = vmul.f32 %v242, %v243
    %vm245 = vcmp.eq.f32.partialorder %v242, inf
    %v246 = vsel %vm245, %v242, %v244
    %vm247 = vcmp.eq.f32.partialorder %v242, 0.0
    %v248 = vand.u32 %v242, 2147483648
    %v249 = vsel %vm247, %v248, %v246
    %v251 = vlaneseq
    %v252 = vshrl.u32 %v251, 7
    %v253 = vsub.s32 %v39, %v252
    %v254 = vrot.slane %v249, %v253
    %vm256 = vcmask 57344
    %257 = vst.msk [vmem:[#allocation5] sm:$0x1] %vm256, %v254
    // Predicated region
    $region26: #{tpu_custom_call.1} parent=1 // pred_check
      _
    $region27: #{tpu_custom_call.1} parent=1 // pred_check_branch
      %259 = sbr.rel (0) target = $region29
    $region28: #{tpu_custom_call.1} parent=1 // pred_region
      %s261 = ssub.s32 16, 16
      %262 = vsyncadd [#allocation4], %s261
      %s264 = sshll.u32 [#allocation5], 4
      %s265 = int_to_ptr.vmem [resolvable:$true] %s264
      %267 = dma.vmem_to_hbm [thread:$0]  %s265, 16, %s5, [#allocation4]
    $region29: #{tpu_custom_call.1} parent=1 // pred_fallthru
      _
    // Predicated region
    $region30: #{tpu_custom_call.1} parent=1 // pred_check
      _
    $region31: #{tpu_custom_call.1} parent=1 // pred_check_branch
      %269 = sbr.rel (0) target = $region33
    $region32: #{tpu_custom_call.1} parent=1 // pred_region
      %270 = dma.done [#allocation4], 16
    $region33: #{tpu_custom_call.1} parent=1 // pred_fallthru
      _
    %271 = vsyncpa [#allocation3], 1
    %272 = vsyncpa [#allocation4], 1

</llo_original>
